<compile_context>
chip_gen: v5e
topology: v5e:2x2
jax: 0.10.0
libtpu: 0.0.40
codegen_flags: <defaults>
</compile_context>

<pallas_src>
import functools

import jax
import jax.numpy as jnp
from jax import lax
from jax.experimental import pallas as pl
from jax.experimental.pallas import tpu as pltpu


def _cnn_kernel(x_ref, w_ref, b_ref, o_ref, *, kernel_size, padding,
                l_out, l_out_p):
    # x_ref: (TB, L, C_in)   channels-last input block (f32 or bf16)
    # w_ref: (K*C_in, F)     im2col-fused conv weight (bf16)
    # b_ref: (1, F)          bias (f32)
    # o_ref: (TB, F)         max-over-time output block (f32)
    tb, l, c_in = x_ref.shape
    f = w_ref.shape[-1]

    # bf16 MXU operands, f32 accumulation (no-op cast if input is already bf16).
    x = x_ref[...].astype(jnp.bfloat16)

    # Zero-pad along time inside the kernel (VMEM-only; no wrapper HBM pass).
    # Right pad includes extra zeros so the number of conv windows is l_out_p
    # (a multiple of 8), which keeps the reshapes below layout-preserving.
    pad_l = padding
    pad_r = (l_out_p + kernel_size - 1) - l - pad_l
    pieces = []
    if pad_l > 0:
        pieces.append(jnp.zeros((tb, pad_l, c_in), dtype=x.dtype))
    pieces.append(x)
    if pad_r > 0:
        pieces.append(jnp.zeros((tb, pad_r, c_in), dtype=x.dtype))
    xp = jnp.concatenate(pieces, axis=1) if len(pieces) > 1 else x
    # xp: (TB, l_out_p + K - 1, C_in)

    # im2col: K shifted views concatenated along channels -> (TB, l_out_p, K*C_in).
    xcol = jnp.concatenate(
        [xp[:, k:k + l_out_p, :] for k in range(kernel_size)], axis=2)

    # One fused matmul for all taps and all TB batch rows.
    xm = xcol.reshape(tb * l_out_p, kernel_size * c_in)       # layout-preserving
    y = jnp.dot(xm, w_ref[...], preferred_element_type=jnp.float32)
    y = y.reshape(tb, l_out_p, f)                             # layout-preserving

    # Mask the alignment-only extra time positions so they cannot win the max.
    # (These windows can overlap real data near the right boundary, so they
    # must be excluded, not just left at zero.)
    if l_out_p != l_out:
        t_idx = lax.broadcasted_iota(jnp.int32, (1, l_out_p, f), 1)
        y = jnp.where(t_idx < l_out, y, -jnp.inf)

    # Max over time first, then bias + ReLU (exact reordering).
    m = jnp.max(y, axis=1)                                    # (TB, F)
    o_ref[...] = jnp.maximum(m + b_ref[...], 0.0).astype(o_ref.dtype)


def cnn_forward(x_blc, weight, bias, *, kernel_size=5, padding=1,
                batch_block=256):
    """Fused Conv1d -> ReLU -> max-over-time.

    x_blc:  (B, L, C_in) channels-last activations — the kernel-facing layout
            (== PyTorch x_emb.transpose(1, 2)); pass bf16 end-to-end to halve
            HBM traffic (the upstream embedding can emit this layout directly).
    weight: (F, C_in, K)  PyTorch nn.Conv1d weight layout.
    bias:   (F,)
    Returns (B, F) float32 == torch.max(relu(conv(x_emb)), dim=2).values.
    """
    b, l, c_in = x_blc.shape
    f, c_in_w, k = weight.shape
    assert c_in == c_in_w and k == kernel_size
    l_out = l + 2 * padding - kernel_size + 1
    assert l_out >= 1, "sequence too short for this kernel/padding"
    l_out_p = ((l_out + 7) // 8) * 8   # sublane-align the conv-window count

    # Tiny parameter-only reshapes (no activation-sized wrapper passes).
    # W2[(k, c), f] = weight[f, c, k]  -> single (K*C_in, F) im2col operand.
    w2 = jnp.transpose(weight, (2, 1, 0)).reshape(k * c_in, f).astype(jnp.bfloat16)
    b2 = bias.reshape(1, f).astype(jnp.float32)

    # Batch blocking (grid = balanced batch blocks, not batch elements).
    if b <= batch_block:
        nb, tb, b_pad = 1, b, b          # single block == full array dims
        x_in = x_blc
    else:
        nb = -(-b // batch_block)
        tb = ((-(-b // nb) + 7) // 8) * 8    # balanced + sublane-aligned blocks
        b_pad = nb * tb
        x_in = jnp.pad(x_blc, ((0, b_pad - b), (0, 0), (0, 0)))

    kern = functools.partial(_cnn_kernel, kernel_size=kernel_size,
                             padding=padding, l_out=l_out, l_out_p=l_out_p)

    out = pl.pallas_call(
        kern,
        out_shape=jax.ShapeDtypeStruct((b_pad, f), jnp.float32),
        grid_spec=pltpu.PrefetchScalarGridSpec(
            num_scalar_prefetch=0,
            grid=(nb,),
            in_specs=[
                pl.BlockSpec((tb, l, c_in), lambda i: (i, 0, 0)),
                # Weight / bias are grid-invariant and tiny; they stay resident
                # in VMEM across grid steps (same block index every step).
                pl.BlockSpec((k * c_in, f), lambda i: (0, 0)),
                pl.BlockSpec((1, f), lambda i: (0, 0)),
            ],
            # (TB, F) output block: masked lane stores (F < 128) are amortized
            # over TB sublane rows per step.
            out_specs=pl.BlockSpec((tb, f), lambda i: (i, 0)),
        ),
        compiler_params=pltpu.CompilerParams(
            dimension_semantics=("parallel",)),
    )(x_in, w2, b2)
    return out[:b]


def _reference(x_ncl, weight_fck, bias, *, padding):
    # Plain-JAX equivalent of the PyTorch forward (NCL input, torch weight layout).
    out = lax.conv_general_dilated(
        x_ncl, weight_fck, window_strides=(1,), padding=[(padding, padding)],
        dimension_numbers=("NCH", "OIH", "NCH"),
        precision=lax.Precision.HIGHEST)
    out = jnp.maximum(out + bias.reshape(1, -1, 1), 0.0)
    return jnp.max(out, axis=2)


if __name__ == "__main__":
    batch = 2
    char_embedding_size = 4    # C_in
    word_embed_size = 32       # F = num_filters
    seq_len = 16               # L
    kernel_size = 5
    padding = 1

    key = jax.random.PRNGKey(0)
    kx, kw, kb = jax.random.split(key, 3)

    # PyTorch Conv1d-style uniform init.
    fan_in = char_embedding_size * kernel_size
    bound = 1.0 / (fan_in ** 0.5)
    weight = jax.random.uniform(
        kw, (word_embed_size, char_embedding_size, kernel_size),
        minval=-bound, maxval=bound, dtype=jnp.float32)
    bias = jax.random.uniform(
        kb, (word_embed_size,), minval=-bound, maxval=bound, dtype=jnp.float32)

    x_ncl = jax.random.normal(
        kx, (batch, char_embedding_size, seq_len), dtype=jnp.float32)

    # Kernel-facing layout: channels-last, bf16 end-to-end.  (The transpose
    # here is test-harness glue; upstream would emit this layout directly.)
    x_blc = jnp.transpose(x_ncl, (0, 2, 1)).astype(jnp.bfloat16)

    out = cnn_forward(x_blc, weight, bias,
                      kernel_size=kernel_size, padding=padding)
    out = jax.block_until_ready(out)
    assert out.shape == (batch, word_embed_size)

    # Tight check: same bf16-rounded operands, f32 math.
    x_r = jnp.transpose(x_blc.astype(jnp.float32), (0, 2, 1))   # back to NCL
    w_r = weight.astype(jnp.bfloat16).astype(jnp.float32)
    ref_tight = _reference(x_r, w_r, bias, padding=padding)
    assert jnp.allclose(out, ref_tight, atol=1e-4, rtol=1e-4)

    # Loose check against the full-f32 PyTorch-equivalent forward
    # (bf16 rounding of the matmul operands is the only difference).
    ref_f32 = _reference(x_ncl, weight, bias, padding=padding)
    assert jnp.allclose(out, ref_f32, atol=5e-2, rtol=5e-2)

    print("KERNEL_OK")
</pallas_src>

<mosaic_0001>
module attributes {stable_mosaic.version = 11 : i64} {
  func.func @_cnn_kernel(%arg0: i32, %arg1: memref<2x16x4xbf16, #tpu.memory_space<vmem>>, %arg2: memref<20x32xbf16, #tpu.memory_space<vmem>>, %arg3: memref<1x32xf32, #tpu.memory_space<vmem>>, %arg4: memref<2x32xf32, #tpu.memory_space<vmem>>) attributes {dimension_semantics = [#tpu.dimension_semantics<parallel>], iteration_bounds = array<i64: 1>, scalar_prefetch = 0 : i64, scratch_operands = 0 : i64, tpu.core_type = #tpu.core_type<tc>, window_params = [{transform_indices = @transform_0, window_bounds = array<i64: 2, 16, 4>}, {pipeline_mode = #tpu.pipeline_mode<synchronous>, transform_indices = @transform_1, window_bounds = array<i64: 20, 32>}, {pipeline_mode = #tpu.pipeline_mode<synchronous>, transform_indices = @transform_2, window_bounds = array<i64: 1, 32>}, {transform_indices = @transform_3, window_bounds = array<i64: 2, 32>}]} {
    %c0 = arith.constant 0 : index
    %c0_0 = arith.constant 0 : index
    %c0_1 = arith.constant 0 : index
    %0 = vector.load %arg1[%c0, %c0_0, %c0_1] : memref<2x16x4xbf16, #tpu.memory_space<vmem>>, vector<2x16x4xbf16>
    %cst = arith.constant 0.000000e+00 : bf16
    %1 = vector.broadcast %cst : bf16 to vector<2x1x4xbf16>
    %cst_2 = arith.constant 0.000000e+00 : bf16
    %2 = vector.broadcast %cst_2 : bf16 to vector<2x3x4xbf16>
    %3 = tpu.concatenate %1, %0, %2 in 1 : vector<2x1x4xbf16>, vector<2x16x4xbf16>, vector<2x3x4xbf16> -> vector<2x20x4xbf16>
    %4 = vector.extract_strided_slice %3 {offsets = [0, 0, 0], sizes = [2, 16, 4], strides = [1, 1, 1]} : vector<2x20x4xbf16> to vector<2x16x4xbf16>
    %5 = vector.extract_strided_slice %3 {offsets = [0, 1, 0], sizes = [2, 16, 4], strides = [1, 1, 1]} : vector<2x20x4xbf16> to vector<2x16x4xbf16>
    %6 = vector.extract_strided_slice %3 {offsets = [0, 2, 0], sizes = [2, 16, 4], strides = [1, 1, 1]} : vector<2x20x4xbf16> to vector<2x16x4xbf16>
    %7 = vector.extract_strided_slice %3 {offsets = [0, 3, 0], sizes = [2, 16, 4], strides = [1, 1, 1]} : vector<2x20x4xbf16> to vector<2x16x4xbf16>
    %8 = vector.extract_strided_slice %3 {offsets = [0, 4, 0], sizes = [2, 16, 4], strides = [1, 1, 1]} : vector<2x20x4xbf16> to vector<2x16x4xbf16>
    %9 = tpu.concatenate %4, %5, %6, %7, %8 in 2 : vector<2x16x4xbf16>, vector<2x16x4xbf16>, vector<2x16x4xbf16>, vector<2x16x4xbf16>, vector<2x16x4xbf16> -> vector<2x16x20xbf16>
    %10 = vector.shape_cast %9 : vector<2x16x20xbf16> to vector<32x20xbf16>
    %c0_3 = arith.constant 0 : index
    %c0_4 = arith.constant 0 : index
    %11 = vector.load %arg2[%c0_3, %c0_4] : memref<20x32xbf16, #tpu.memory_space<vmem>>, vector<20x32xbf16>
    %cst_5 = arith.constant dense<0.000000e+00> : vector<32x32xf32>
    %12 = tpu.matmul %10, %11, %cst_5 {dimension_numbers = #tpu.dot_dimension_numbers<[1], [0], [0], [1], [0, 0, 1, 1], [], []>} : vector<32x20xbf16>, vector<20x32xbf16>, vector<32x32xf32> -> vector<32x32xf32>
    %13 = vector.shape_cast %12 : vector<32x32xf32> to vector<2x16x32xf32>
    %14 = tpu.iota {dimensions = array<i32: 1>} : vector<1x16x32xi32>
    %c14_i32 = arith.constant 14 : i32
    %15 = vector.broadcast %c14_i32 : i32 to vector<1x16x32xi32>
    %16 = arith.cmpi slt, %14, %15 : vector<1x16x32xi32>
    %cst_6 = arith.constant 0xFF800000 : f32
    %17 = vector.shape_cast %16 : vector<1x16x32xi1> to vector<1x16x32xi1>
    %18 = vector.broadcast %17 : vector<1x16x32xi1> to vector<2x16x32xi1>
    %19 = vector.broadcast %cst_6 : f32 to vector<2x16x32xf32>
    %20 = arith.select %18, %13, %19 : vector<2x16x32xi1>, vector<2x16x32xf32>
    %cst_7 = arith.constant dense<0xFF800000> : vector<2x32xf32>
    %21 = vector.multi_reduction <maximumf>, %20, %cst_7 [1] : vector<2x16x32xf32> to vector<2x32xf32>
    %c0_8 = arith.constant 0 : index
    %c0_9 = arith.constant 0 : index
    %22 = vector.load %arg3[%c0_8, %c0_9] : memref<1x32xf32, #tpu.memory_space<vmem>>, vector<1x32xf32>
    %23 = vector.broadcast %22 : vector<1x32xf32> to vector<2x32xf32>
    %24 = arith.addf %21, %23 : vector<2x32xf32>
    %cst_10 = arith.constant 0.000000e+00 : f32
    %25 = vector.broadcast %cst_10 : f32 to vector<2x32xf32>
    %26 = arith.maximumf %24, %25 : vector<2x32xf32>
    %c0_11 = arith.constant 0 : index
    %c0_12 = arith.constant 0 : index
    %27 = vector.load %arg4[%c0_11, %c0_12] : memref<2x32xf32, #tpu.memory_space<vmem>>, vector<2x32xf32>
    tpu.vector_store %arg4[%c0_11, %c0_12], %26 {strides = array<i32>} : memref<2x32xf32, #tpu.memory_space<vmem>>, vector<2x32xf32>,
    return
  }
  func.func @transform_0(%arg0: i32) -> (i32, i32, i32) {
    %c0_i32 = arith.constant 0 : i32
    %c0_i32_0 = arith.constant 0 : i32
    %c0_i32_1 = arith.constant 0 : i32
    return %arg0, %c0_i32, %c0_i32_0 : i32, i32, i32
  }
  func.func @transform_1(%arg0: i32) -> (i32, i32) {
    %c0_i32 = arith.constant 0 : i32
    %c0_i32_0 = arith.constant 0 : i32
    %c0_i32_1 = arith.constant 0 : i32
    return %c0_i32, %c0_i32_0 : i32, i32
  }
  func.func @transform_2(%arg0: i32) -> (i32, i32) {
    %c0_i32 = arith.constant 0 : i32
    %c0_i32_0 = arith.constant 0 : i32
    %c0_i32_1 = arith.constant 0 : i32
    return %c0_i32, %c0_i32_0 : i32, i32
  }
  func.func @transform_3(%arg0: i32) -> (i32, i32) {
    %c0_i32 = arith.constant 0 : i32
    %c0_i32_0 = arith.constant 0 : i32
    return %arg0, %c0_i32 : i32, i32
  }
}

</mosaic_0001>

<llo_original>
// kernel: tpu_custom_call.1
$region0: #{tpu_custom_call.1}
  #allocation0 [shape = 'u32[]', space=smem, size = 0x4, offset = 0x4, fixed_abs, tag = 'smem constant byte address 0x4 - core index']
  #allocation1 [shape = 'u32[72,128]{1,0:T(1,128)}', space=vmem, size = 0x9000, scoped, tag = 'internal scratch']
  %s0 = inlined_call_operand.vmem [shape: bf16[2,16,4], index: 0, kind: input, shape index: {}]
  %s1 = inlined_call_operand.vmem [shape: bf16[20,32], index: 1, kind: input, shape index: {}]
  %s2 = inlined_call_operand.vmem [shape: f32[1,32], index: 2, kind: input, shape index: {}]
  %s3 = inlined_call_operand.hbm [shape: f32[2,32], index: 3, kind: output, shape index: {}]
  %s4 = sld [smem:[#allocation0]]
  $region22: #{tpu_custom_call.1} parent=0
    _
  %s6 = ssub.s32 1, %s4
  %s7 = scalar_select 0, %s6, %s4
  $region1: #{tpu_custom_call.1} parent=0
    #allocation2 [shape = 'u8[1024]{0}', space=vmem, size = 0x400, scoped, tag = 'output window, operand 0, single buffered']
    #allocation3 [shape = 's32[1]{0}', space=sflag, size = 0x4, scoped, tag = 'scoped memory for tpu_custom_call.1']
    %8 = vsyncpa [#allocation3], 0
    // Predicated region
    $region2: #{tpu_custom_call.1} parent=1 // pred_check
      _
    $region3: #{tpu_custom_call.1} parent=1 // pred_check_branch
      %10 = sbr.rel (0) target = $region5
    $region4: #{tpu_custom_call.1} parent=1 // pred_region
      _
    $region5: #{tpu_custom_call.1} parent=1 // pred_fallthru
      _
    // Predicated region
    $region6: #{tpu_custom_call.1} parent=1 // pred_check
      _
    $region7: #{tpu_custom_call.1} parent=1 // pred_check_branch
      %12 = sbr.rel (0) target = $region9
    $region8: #{tpu_custom_call.1} parent=1 // pred_region
      _
    $region9: #{tpu_custom_call.1} parent=1 // pred_fallthru
      _
    // Predicated region
    $region10: #{tpu_custom_call.1} parent=1 // pred_check
      _
    $region11: #{tpu_custom_call.1} parent=1 // pred_check_branch
      %14 = sbr.rel (0) target = $region13
    $region12: #{tpu_custom_call.1} parent=1 // pred_region
      _
    $region13: #{tpu_custom_call.1} parent=1 // pred_fallthru
      _
    %v16 = vld [vmem:[%s0] sm:$0xf]
    %v17 = vld [vmem:[%s0 + $0x4] sm:$0xf]
    %v18 = vld [vmem:[%s0 + $0x8] sm:$0xf]
    %v19 = vld [vmem:[%s0 + $0xc] sm:$0xf]
    %v24 = vunpack.c.l.b16 %v16
    %v25 = vunpack.c.l.b16 %v17
    %v26 = vunpack.c.l.b16 %v18
    %v27 = vunpack.c.l.b16 %v19
    %v28 = vpack.c.b16 %v25, %v24
    %v29 = vpack.c.b16 %v27, %v26
    %v31 = vshrl.u32 %v28, 16
    %v33 = vrot.slane %v31, 7
    %v34 = vshll.u32 %v28, 16
    %v36 = vor.u32 %v33, %v34
    %v38 = vshrl.u32 %v29, 16
    %v40 = vrot.slane %v38, 7
    %v41 = vshll.u32 %v29, 16
    %v43 = vor.u32 %v40, %v41
    %vm48 = vcmask 1040384
    %vm49 = vsmask.f32 256
    %vm50 = vmand %vm48, %vm49
    %v51 = vsel %vm50, 0, %v36
    %v52 = vsel %vm50, 0, %v43
    %v53 = vsel %vm50, %v33, 0
    %v54 = vsel %vm50, %v40, 0
    %vm55 = vsmask.f32 7424
    %v57 = vshrl.u32 %v51, 16
    %v59 = vshll.u32 %v51, 16
    %v61 = vrot.slane %v59, 1
    %v62 = vor.u32 %v57, %v61
    %v64 = vshll.u32 %v53, 16
    %v66 = vrot.slane %v64, 1
    %v67 = vsel %vm55, %v62, %v66
    %v69 = vshrl.u32 %v52, 16
    %v71 = vshll.u32 %v52, 16
    %v73 = vrot.slane %v71, 1
    %v74 = vor.u32 %v69, %v73
    %v76 = vshll.u32 %v54, 16
    %v78 = vrot.slane %v76, 1
    %v79 = vsel %vm55, %v74, %v78
    %80 = vrot.lane.b32.xlu0 %v67, 4
    %v81 = vpop.permute.xlu0 %80
    %82 = vrot.lane.b32.xlu0 %v79, 4
    %v83 = vpop.permute.xlu0 %82
    %vm88 = vcmask 1046528
    %v89 = vrot.slane %v51, 1
    %v90 = vrot.slane %v53, 1
    %v91 = vsel %vm88, %v89, %v90
    %v92 = vrot.slane %v52, 1
    %v93 = vrot.slane %v54, 1
    %v94 = vsel %vm88, %v92, %v93
    %95 = vrot.lane.b32.xlu0 %v91, 8
    %v96 = vpop.permute.xlu0 %95
    %97 = vrot.lane.b32.xlu0 %v94, 8
    %v98 = vpop.permute.xlu0 %97
    %vm99 = vsmask.f32 6400
    %v100 = vrot.slane %v57, 1
    %v101 = vrot.slane %v59, 2
    %v102 = vor.u32 %v100, %v101
    %v103 = vshrl.u32 %v53, 16
    %v105 = vrot.slane %v103, 1
    %v106 = vrot.slane %v64, 2
    %v107 = vor.u32 %v105, %v106
    %v108 = vsel %vm99, %v102, %v107
    %v109 = vrot.slane %v69, 1
    %v110 = vrot.slane %v71, 2
    %v111 = vor.u32 %v109, %v110
    %v112 = vshrl.u32 %v54, 16
    %v114 = vrot.slane %v112, 1
    %v115 = vrot.slane %v76, 2
    %v116 = vor.u32 %v114, %v115
    %v117 = vsel %vm99, %v111, %v116
    %118 = vrot.lane.b32.xlu0 %v108, 12
    %v119 = vpop.permute.xlu0 %118
    %120 = vrot.lane.b32.xlu0 %v117, 12
    %v121 = vpop.permute.xlu0 %120
    %vm122 = vcmask 1045504
    %v123 = vrot.slane %v51, 2
    %v124 = vrot.slane %v53, 2
    %v125 = vsel %vm122, %v123, %v124
    %v126 = vrot.slane %v52, 2
    %v127 = vrot.slane %v54, 2
    %v128 = vsel %vm122, %v126, %v127
    %129 = vrot.lane.b32.xlu0 %v125, 16
    %v130 = vpop.permute.xlu0 %129
    %131 = vrot.lane.b32.xlu0 %v128, 16
    %v132 = vpop.permute.xlu0 %131
    %vm133 = vcmask 31744
    %v135 = vsel %vm133, %v51, %v81
    %v137 = vsel %vm133, %v52, %v83
    %vm138 = vcmask 64512
    %v140 = vsel %vm138, %v135, %v96
    %v142 = vsel %vm138, %v137, %v98
    %vm143 = vcmask 97280
    %v145 = vsel %vm143, %v140, %v119
    %v147 = vsel %vm143, %v142, %v121
    %vm148 = vcmask 130048
    %v150 = vsel %vm148, %v145, %v130
    %v152 = vsel %vm148, %v147, %v132
    %v153 = vld [vmem:[%s1] sm:$0xf]
    %v154 = vld [vmem:[%s1 + $0x4] sm:$0xf]
    %v155 = vld [vmem:[%s1 + $0x8] sm:$0x3]
    %v159 = vunpack.c.l.b16 %v153
    %v160 = vunpack.c.l.b16 %v154
    %v161 = vunpack.c.l.b16 %v155
    %v162 = vpack.c.b16 %v160, %v159
    %v163 = vpack.c.b16 %v161, %v161
    %vm165 = vcmask 162816
    %v166 = vsel %vm165, %v150, 0
    %v168 = vsel %vm165, %v152, 0
    %vm170 = vcmask 1041408
    %v172 = vsel %vm170, %v163, 0
    %174 = vmatpush.bf16.msra.mxu0 0
    %175 = vmatpush.bf16.msra.mxu0 0
    %176 = vmatpush.bf16.msra.mxu0 0
    %177 = vmatpush.bf16.msra.mxu0 0
    %178 = vmatpush.bf16.msra.mxu0 0
    %179 = vmatpush.bf16.msra.mxu0 0
    %180 = vmatpush.bf16.msra.mxu0 %v172
    %181 = vmatpush.bf16.msra.mxu0 %v162
    %182 = vmatmul.bf16.gmra.mxu0 %v166
    %v183 = vpop.f32.mrf.mxu0
    %v184 = vadd.f32 0.0, %v183
    %v185 = vpop.f32.mrf.mxu0
    %v186 = vadd.f32 0.0, %v185
    %187 = vmatmul.bf16.gmra.mxu0 %v168
    %v188 = vpop.f32.mrf.mxu0
    %v189 = vadd.f32 0.0, %v188
    %v190 = vpop.f32.mrf.mxu0
    %v191 = vadd.f32 0.0, %v190
    %192 = vdwg.mxu0
    %v193 = vlaneseq
    %v194 = vshrl.u32 %v193, 7
    %v195 = vadd.s32 %v194, 8
    %vm196 = vcmp.lt.s32.totalorder %v194, 14
    %vm197 = vcmp.lt.s32.totalorder %v195, 14
    %v198 = vsel %vm196, 1, 0
    %v199 = vsel %vm197, 1, 0
    %vm200 = vcmp.eq.s32.totalorder %v198, 1
    %vm201 = vcmp.eq.s32.totalorder %v199, 1
    %v202 = vsel %vm200, %v184, -inf
    %v203 = vsel %vm201, %v186, -inf
    %v204 = vsel %vm200, %v189, -inf
    %v205 = vsel %vm201, %v191, -inf
    %vm206 = vcmask 261120
    %v207 = vsel %vm206, %v202, -inf
    %v208 = vsel %vm206, %v203, -inf
    %v209 = vmax.f32 %v207, %v208
    %v210 = vrot.slane %v209, 4
    %v211 = vmax.f32 %v209, %v210
    %v212 = vrot.slane %v211, 2
    %v213 = vmax.f32 %v211, %v212
    %v214 = vrot.slane %v213, 1
    %v215 = vmax.f32 %v213, %v214
    %v216 = vsel %vm206, %v204, -inf
    %v217 = vsel %vm206, %v205, -inf
    %v218 = vmax.f32 %v216, %v217
    %v219 = vrot.slane %v218, 4
    %v220 = vmax.f32 %v218, %v219
    %v221 = vrot.slane %v220, 2
    %v222 = vmax.f32 %v220, %v221
    %v223 = vrot.slane %v222, 1
    %v224 = vmax.f32 %v222, %v223
    %v225 = vld [vmem:[%s2] sm:$0x1]
    %v227 = vperm.slane %v225, 0
    %v229 = vadd.f32 %v215, %v227
    %v230 = vadd.f32 %v224, %v227
    %v231 = vmax.f32 %v229, 0.0
    %v232 = vmax.f32 %v230, 0.0
    %v235 = vrot.slane %v232, 7
    %vm236 = vcmask 1041409
    %v237 = vsel %vm236, %v235, %v231
    %vm239 = vcmask 254976
    %240 = vst.msk [vmem:[#allocation2] sm:$0x3] %vm239, %v237
    // Predicated region
    $region14: #{tpu_custom_call.1} parent=1 // pred_check
      _
    $region15: #{tpu_custom_call.1} parent=1 // pred_check_branch
      %242 = sbr.rel (0) target = $region17
    $region16: #{tpu_custom_call.1} parent=1 // pred_region
      %244 = vsyncadd [#allocation3], 0
      %s246 = sshll.u32 [#allocation2], 4
      %s247 = int_to_ptr.vmem [resolvable:$true] %s246
      %s248 = sshll.u32 %s3, 4
      %s249 = int_to_ptr.hbm [resolvable:$true] %s248
      %251 = dma.vmem_to_hbm [thread:$0]  %s247, 32, %s249, [#allocation3]
    $region17: #{tpu_custom_call.1} parent=1 // pred_fallthru
      _
    // Predicated region
    $region18: #{tpu_custom_call.1} parent=1 // pred_check
      _
    $region19: #{tpu_custom_call.1} parent=1 // pred_check_branch
      %253 = sbr.rel (0) target = $region21
    $region20: #{tpu_custom_call.1} parent=1 // pred_region
      %255 = dma.done [#allocation3], 32
    $region21: #{tpu_custom_call.1} parent=1 // pred_fallthru
      _
    %256 = vsyncpa [#allocation3], 1

</llo_original>
